<compile_context>
chip_gen: v5e
topology: v5e:2x2
jax: 0.10.0
libtpu: 0.0.40
codegen_flags: <defaults>
</compile_context>

<pallas_src>
import math

import jax
import jax.numpy as jnp
from jax.experimental import pallas as pl
from jax.experimental.pallas import tpu as pltpu

# ----------------------------------------------------------------------------
# Synthetic vision-tower config (small shapes, consistent with the module)
# ----------------------------------------------------------------------------
IMAGE_SIZE = 16          # vision_tower.config.image_size
PATCH_SIZE = 4           # vision_tower.config.patch_size
EMBED_DIM = 32           # vision_tower.config.embed_dim
IN_CHANS = 3             # RGB images
S2_SCALES = [16, 32]     # s2_scales="16,32" (sorted)
S2_SPLIT_SIZE = S2_SCALES[0]

K_RAW = IN_CHANS * PATCH_SIZE * PATCH_SIZE    # 48  (C, ph, pw conv-weight flatten order)
K_PAD = 64                                    # K_RAW + ones(bias) column + 15 zero columns
N_PAD = 128                                   # lane-dense output channels (EMBED_DIM padded)


# ----------------------------------------------------------------------------
# Pallas kernel: fused patch-embedding matmul (bias folded in) + GELU epilogue
# ----------------------------------------------------------------------------
# Layout:
#   x : (M, K_PAD)   bf16  im2col patches for BOTH scales, ones column at K_RAW, zeros after
#   w : (K_PAD, N_PAD) bf16 conv weight (rows 0..K_RAW-1), bias (row K_RAW), zeros elsewhere
#   o : (M, N_PAD)   bf16  lane-dense output; real channels are [:, :EMBED_DIM]
def _patch_embed_kernel(x_ref, w_ref, o_ref):
    acc = jnp.dot(x_ref[...], w_ref[...], preferred_element_type=jnp.float32)
    # TODO(synk): PyTorch nn.GELU() defaults to exact erf GELU; tanh approximation (EUP
    # tanh + a short VALU polynomial) is used here.
    o_ref[...] = jax.nn.gelu(acc, approximate=True).astype(o_ref.dtype)


def patch_embed_matmul(patches, weight):
    M, K = patches.shape
    _, N = weight.shape
    return pl.pallas_call(
        _patch_embed_kernel,
        out_shape=jax.ShapeDtypeStruct((M, N), jnp.bfloat16),
        in_specs=[
            pl.BlockSpec(memory_space=pltpu.MemorySpace.VMEM),
            pl.BlockSpec(memory_space=pltpu.MemorySpace.VMEM),
        ],
        out_specs=pl.BlockSpec(memory_space=pltpu.MemorySpace.VMEM),
    )(patches, weight)


# ----------------------------------------------------------------------------
# Glue: im2col, chessboard split/merge, area downsample (all NCHW, like PyTorch)
# ----------------------------------------------------------------------------
def _extract_patches(x, ps):
    # x: (B, C, H, W) -> (B*nh*nw, C*ps*ps), patch-flatten order = (C, ph, pw)
    B, C, H, W = x.shape
    nh, nw = H // ps, W // ps
    x = x.reshape(B, C, nh, ps, nw, ps)
    x = x.transpose(0, 2, 4, 1, 3, 5)            # (B, nh, nw, C, ps, ps)
    return x.reshape(B * nh * nw, C * ps * ps), (B, nh, nw)


def _split_chessboard(x, num_split):
    # s2wrapper.split_chessboard: tile (i, j) lands at batch block (i*ns + j)*B.
    if num_split == 1:
        return x
    B, C, H, W = x.shape
    h, w = H // num_split, W // num_split
    x = x.reshape(B, C, num_split, h, num_split, w)
    x = x.transpose(2, 4, 0, 1, 3, 5)            # (ns_i, ns_j, B, C, h, w)
    return x.reshape(num_split * num_split * B, C, h, w)


def _merge_chessboard(x, num_split):
    # s2wrapper.merge_chessboard (inverse of the split above).
    if num_split == 1:
        return x
    BT, C, h, w = x.shape
    B = BT // (num_split * num_split)
    x = x.reshape(num_split, num_split, B, C, h, w)
    x = x.transpose(2, 3, 0, 4, 1, 5)            # (B, C, ns_i, h, ns_j, w)
    return x.reshape(B, C, num_split * h, num_split * w)


def _area_downsample(x, out_size):
    # F.interpolate(mode='area') for integer downsample factors == average pooling.
    B, C, H, W = x.shape
    if H == out_size and W == out_size:
        return x
    f = H // out_size
    return x.reshape(B, C, out_size, f, out_size, f).mean(axis=(3, 5))


# ----------------------------------------------------------------------------
# FastVitVisionTowerS2.forward: S2 multiscale wrapper with a single fused kernel call
# ----------------------------------------------------------------------------
def fastvit_s2_forward(images, params):
    b, c, _, _ = images.shape
    num_splits = [int(math.ceil(s / S2_SPLIT_SIZE)) for s in S2_SCALES]

    # --- per-scale image prep (bicubic scale-up + chessboard split), collect im2col LHS ---
    # TODO(synk): jax.image.resize bicubic uses Keys a=-0.5; PyTorch bicubic uses a=-0.75,
    # so the S2 scale-up path will not bit-match the reference s2wrapper.
    patch_mats = []
    per_scale = []
    for size, ns in zip(S2_SCALES, num_splits):
        xi = jax.image.resize(images.astype(jnp.float32), (b, c, size, size), method="bicubic")
        xi = xi.astype(jnp.bfloat16)                 # cast once, right after the resize
        xi = _split_chessboard(xi, ns)
        # forward_feature: resize tiles to the vision tower image size if needed (dead code
        # at the current config; TODO(synk): PyTorch default is antialias=False here).
        if xi.shape[2] != IMAGE_SIZE or xi.shape[3] != IMAGE_SIZE:
            xi = jax.image.resize(
                xi, (xi.shape[0], xi.shape[1], IMAGE_SIZE, IMAGE_SIZE),
                method="bilinear", antialias=True)
        p, meta = _extract_patches(xi, PATCH_SIZE)
        patch_mats.append(p)
        per_scale.append((ns, meta, p.shape[0]))

    # --- fuse both scales into one bf16 (M_total, K_PAD) LHS, single kernel launch ---
    lhs = jnp.concatenate(patch_mats, axis=0)                          # (M_total, K_RAW) bf16
    m_total = lhs.shape[0]
    lhs = jnp.concatenate(
        [lhs,
         jnp.ones((m_total, 1), jnp.bfloat16),                         # ones column -> bias row
         jnp.zeros((m_total, K_PAD - K_RAW - 1), jnp.bfloat16)],       # zero K padding
        axis=1)

    feats_all = patch_embed_matmul(lhs, params["w_packed"])            # (M_total, N_PAD) bf16
    feats_all = feats_all[:, :EMBED_DIM]                               # drop lane padding

    # --- unfuse: per-scale merge chessboard, area downsample, channel concat, 'bnc' ---
    outs = []
    off = 0
    for ns, (B, nh, nw), m in per_scale:
        f = feats_all[off:off + m].reshape(B, nh, nw, EMBED_DIM).transpose(0, 3, 1, 2)
        off += m
        outs.append(_merge_chessboard(f, ns))                          # (b, E, ns*fh, ns*fw)
    output_size = outs[0].shape[-2]
    outs = [_area_downsample(o, output_size) for o in outs]
    out = jnp.concatenate(outs, axis=1)                                # (b, 2*E, fh, fw)
    B, C2, H, W = out.shape
    return out.transpose(0, 2, 3, 1).reshape(B, H * W, C2)             # 'bnc'


def pack_params(w_conv, bias):
    # PyTorch Conv2d weight (N, C, ps, ps) -> (K_RAW, N), then pad to a (K_PAD, N_PAD) bf16
    # slab with the bias folded in as row K_RAW; padding rows/cols are zero.
    w = w_conv.reshape(EMBED_DIM, K_RAW).T                             # (K_RAW, EMBED_DIM)
    w_packed = jnp.zeros((K_PAD, N_PAD), jnp.float32)
    w_packed = w_packed.at[:K_RAW, :EMBED_DIM].set(w)
    w_packed = w_packed.at[K_RAW, :EMBED_DIM].set(bias)
    return {"w_packed": w_packed.astype(jnp.bfloat16)}


# ----------------------------------------------------------------------------
# Main
# ----------------------------------------------------------------------------
if __name__ == "__main__":
    key = jax.random.PRNGKey(0)
    k_img, k_w, k_b = jax.random.split(key, 3)

    w_conv = jax.random.normal(k_w, (EMBED_DIM, IN_CHANS, PATCH_SIZE, PATCH_SIZE),
                               dtype=jnp.float32) * 0.05
    bias = jax.random.normal(k_b, (EMBED_DIM,), dtype=jnp.float32) * 0.01
    params = pack_params(w_conv, bias)

    # Example input: batch=2 RGB images at the small S2 scale (NCHW, like PyTorch).
    images = jax.random.normal(k_img, (2, IN_CHANS, 16, 16), dtype=jnp.float32)

    fwd = jax.jit(fastvit_s2_forward)
    out = fwd(images, params)
    out = jax.block_until_ready(out)

    expected_tokens = (IMAGE_SIZE // PATCH_SIZE) ** 2            # num_patches at base scale
    expected_dim = EMBED_DIM * len(S2_SCALES)                    # output_dim = 2 * embed_dim
    assert out.shape == (2, expected_tokens, expected_dim), out.shape
    assert jnp.all(jnp.isfinite(out.astype(jnp.float32)))
    print("KERNEL_OK")
</pallas_src>

<mosaic_0001>
module attributes {stable_mosaic.version = 11 : i64} {
  func.func @_patch_embed_kernel(%arg0: memref<160x64xbf16, #tpu.memory_space<vmem>>, %arg1: memref<64x128xbf16, #tpu.memory_space<vmem>>, %arg2: memref<160x128xbf16, #tpu.memory_space<vmem>>) attributes {dimension_semantics = [], scalar_prefetch = 0 : i64, scratch_operands = 0 : i64, tpu.core_type = #tpu.core_type<tc>} {
    %c0 = arith.constant 0 : index
    %c0_0 = arith.constant 0 : index
    %0 = vector.load %arg0[%c0, %c0_0] : memref<160x64xbf16, #tpu.memory_space<vmem>>, vector<160x64xbf16>
    %c0_1 = arith.constant 0 : index
    %c0_2 = arith.constant 0 : index
    %1 = vector.load %arg1[%c0_1, %c0_2] : memref<64x128xbf16, #tpu.memory_space<vmem>>, vector<64x128xbf16>
    %cst = arith.constant dense<0.000000e+00> : vector<160x128xf32>
    %2 = tpu.matmul %0, %1, %cst {dimension_numbers = #tpu.dot_dimension_numbers<[1], [0], [0], [1], [0, 0, 1, 1], [], []>} : vector<160x64xbf16>, vector<64x128xbf16>, vector<160x128xf32> -> vector<160x128xf32>
    %3 = arith.mulf %2, %2 : vector<160x128xf32>
    %4 = arith.mulf %2, %3 : vector<160x128xf32>
    %cst_3 = arith.constant 4.471500e-02 : f32
    %5 = vector.broadcast %cst_3 : f32 to vector<160x128xf32>
    %6 = arith.mulf %5, %4 : vector<160x128xf32>
    %7 = arith.addf %2, %6 : vector<160x128xf32>
    %cst_4 = arith.constant 0.797884583 : f32
    %8 = vector.broadcast %cst_4 : f32 to vector<160x128xf32>
    %9 = arith.mulf %8, %7 : vector<160x128xf32>
    %10 = math.tanh %9 : vector<160x128xf32>
    %cst_5 = arith.constant 1.000000e+00 : f32
    %11 = vector.broadcast %cst_5 : f32 to vector<160x128xf32>
    %12 = arith.addf %11, %10 : vector<160x128xf32>
    %cst_6 = arith.constant 5.000000e-01 : f32
    %13 = vector.broadcast %cst_6 : f32 to vector<160x128xf32>
    %14 = arith.mulf %13, %12 : vector<160x128xf32>
    %15 = arith.mulf %2, %14 : vector<160x128xf32>
    %16 = arith.truncf %15 : vector<160x128xf32> to vector<160x128xbf16>
    %c0_7 = arith.constant 0 : index
    %c0_8 = arith.constant 0 : index
    %17 = vector.load %arg2[%c0_7, %c0_8] : memref<160x128xbf16, #tpu.memory_space<vmem>>, vector<160x128xbf16>
    tpu.vector_store %arg2[%c0_7, %c0_8], %16 {strides = array<i32>} : memref<160x128xbf16, #tpu.memory_space<vmem>>, vector<160x128xbf16>,
    return
  }
}

</mosaic_0001>

<llo_original>
// kernel: fastvit_s2_forward.1
$region0: #{fastvit_s2_forward.1}
  #allocation0 [shape = 'u32[]', space=smem, size = 0x4, offset = 0x4, fixed_abs, tag = 'smem constant byte address 0x4 - core index']
  #allocation1 [shape = 'u32[72,128]{1,0:T(1,128)}', space=vmem, size = 0x9000, scoped, tag = 'internal scratch']
  %s0 = inlined_call_operand.vmem [shape: bf16[160,64], index: 0, kind: input, shape index: {}]
  %s1 = inlined_call_operand.vmem [shape: bf16[64,128], index: 1, kind: input, shape index: {}]
  %s2 = inlined_call_operand.vmem [shape: bf16[160,128], index: 2, kind: output, shape index: {}]
  %s3 = sld [smem:[#allocation0]]
  $region18: #{fastvit_s2_forward.1} parent=0
    _
  %s5 = ssub.s32 1, %s3
  %s6 = scalar_select 0, %s5, %s3
  // Predicated region
  $region2: #{fastvit_s2_forward.1} parent=0 // pred_check
    _
  $region3: #{fastvit_s2_forward.1} parent=0 // pred_check_branch
    %8 = sbr.rel (0) target = $region5
  $region4: #{fastvit_s2_forward.1} parent=0 // pred_region
    _
  $region5: #{fastvit_s2_forward.1} parent=0 // pred_fallthru
    _
  // Predicated region
  $region6: #{fastvit_s2_forward.1} parent=0 // pred_check
    _
  $region7: #{fastvit_s2_forward.1} parent=0 // pred_check_branch
    %10 = sbr.rel (0) target = $region9
  $region8: #{fastvit_s2_forward.1} parent=0 // pred_region
    _
  $region9: #{fastvit_s2_forward.1} parent=0 // pred_fallthru
    _
  %v12 = vld [vmem:[%s0] sm:$0xf]
  %v13 = vld [vmem:[%s0 + $0x4] sm:$0xf]
  %v14 = vld [vmem:[%s0 + $0x8] sm:$0xf]
  %v15 = vld [vmem:[%s0 + $0xc] sm:$0xf]
  %v16 = vld [vmem:[%s0 + $0x10] sm:$0xf]
  %v17 = vld [vmem:[%s0 + $0x14] sm:$0xf]
  %v18 = vld [vmem:[%s0 + $0x18] sm:$0xf]
  %v19 = vld [vmem:[%s0 + $0x1c] sm:$0xf]
  %v20 = vld [vmem:[%s0 + $0x20] sm:$0xf]
  %v21 = vld [vmem:[%s0 + $0x24] sm:$0xf]
  %v22 = vld [vmem:[%s0 + $0x28] sm:$0xf]
  %v23 = vld [vmem:[%s0 + $0x2c] sm:$0xf]
  %v24 = vld [vmem:[%s0 + $0x30] sm:$0xf]
  %v25 = vld [vmem:[%s0 + $0x34] sm:$0xf]
  %v26 = vld [vmem:[%s0 + $0x38] sm:$0xf]
  %v27 = vld [vmem:[%s0 + $0x3c] sm:$0xf]
  %v28 = vld [vmem:[%s0 + $0x40] sm:$0xf]
  %v29 = vld [vmem:[%s0 + $0x44] sm:$0xf]
  %v30 = vld [vmem:[%s0 + $0x48] sm:$0xf]
  %v31 = vld [vmem:[%s0 + $0x4c] sm:$0xf]
  %v32 = vld [vmem:[%s1] sm:$0xf]
  %v33 = vld [vmem:[%s1 + $0x4] sm:$0xf]
  %v34 = vld [vmem:[%s1 + $0x8] sm:$0xf]
  %v35 = vld [vmem:[%s1 + $0xc] sm:$0xf]
  %v36 = vld [vmem:[%s1 + $0x10] sm:$0xf]
  %v37 = vld [vmem:[%s1 + $0x14] sm:$0xf]
  %v38 = vld [vmem:[%s1 + $0x18] sm:$0xf]
  %v39 = vld [vmem:[%s1 + $0x1c] sm:$0xf]
  %v60 = vunpack.c.l.b16 %v12
  %v61 = vunpack.c.l.b16 %v13
  %v62 = vunpack.c.l.b16 %v14
  %v63 = vunpack.c.l.b16 %v15
  %v64 = vunpack.c.l.b16 %v16
  %v65 = vunpack.c.l.b16 %v17
  %v66 = vunpack.c.l.b16 %v18
  %v67 = vunpack.c.l.b16 %v19
  %v68 = vunpack.c.l.b16 %v20
  %v69 = vunpack.c.l.b16 %v21
  %v70 = vunpack.c.l.b16 %v22
  %v71 = vunpack.c.l.b16 %v23
  %v72 = vunpack.c.l.b16 %v24
  %v73 = vunpack.c.l.b16 %v25
  %v74 = vunpack.c.l.b16 %v26
  %v75 = vunpack.c.l.b16 %v27
  %v76 = vunpack.c.l.b16 %v28
  %v77 = vunpack.c.l.b16 %v29
  %v78 = vunpack.c.l.b16 %v30
  %v79 = vunpack.c.l.b16 %v31
  %v80 = vpack.c.b16 %v61, %v60
  %v81 = vpack.c.b16 %v63, %v62
  %v82 = vpack.c.b16 %v65, %v64
  %v83 = vpack.c.b16 %v67, %v66
  %v84 = vpack.c.b16 %v69, %v68
  %v85 = vpack.c.b16 %v71, %v70
  %v86 = vpack.c.b16 %v73, %v72
  %v87 = vpack.c.b16 %v75, %v74
  %v88 = vpack.c.b16 %v77, %v76
  %v89 = vpack.c.b16 %v79, %v78
  %v98 = vunpack.c.l.b16 %v32
  %v99 = vunpack.c.l.b16 %v33
  %v100 = vunpack.c.l.b16 %v34
  %v101 = vunpack.c.l.b16 %v35
  %v102 = vunpack.c.l.b16 %v36
  %v103 = vunpack.c.l.b16 %v37
  %v104 = vunpack.c.l.b16 %v38
  %v105 = vunpack.c.l.b16 %v39
  %v106 = vpack.c.b16 %v99, %v98
  %v107 = vpack.c.b16 %v101, %v100
  %v108 = vpack.c.b16 %v103, %v102
  %v109 = vpack.c.b16 %v105, %v104
  %vm114 = vcmask 523264
  %v116 = vsel %vm114, %v80, 0
  %v119 = vsel %vm114, %v81, 0
  %v122 = vsel %vm114, %v82, 0
  %v125 = vsel %vm114, %v83, 0
  %v128 = vsel %vm114, %v84, 0
  %v131 = vsel %vm114, %v85, 0
  %v134 = vsel %vm114, %v86, 0
  %v137 = vsel %vm114, %v87, 0
  %v140 = vsel %vm114, %v88, 0
  %v143 = vsel %vm114, %v89, 0
  %145 = vmatpush.bf16.msra.mxu0 0
  %146 = vmatpush.bf16.msra.mxu0 0
  %147 = vmatpush.bf16.msra.mxu0 0
  %148 = vmatpush.bf16.msra.mxu0 0
  %149 = vmatpush.bf16.msra.mxu0 %v109
  %150 = vmatpush.bf16.msra.mxu0 %v108
  %151 = vmatpush.bf16.msra.mxu0 %v107
  %152 = vmatpush.bf16.msra.mxu0 %v106
  %153 = vmatmul.bf16.gmra.mxu0 %v116
  %v154 = vpop.f32.mrf.mxu0
  %v155 = vadd.f32 0.0, %v154
  %v156 = vpop.f32.mrf.mxu0
  %v157 = vadd.f32 0.0, %v156
  %158 = vmatmul.bf16.gmra.mxu0 %v119
  %v159 = vpop.f32.mrf.mxu0
  %v160 = vadd.f32 0.0, %v159
  %v161 = vpop.f32.mrf.mxu0
  %v162 = vadd.f32 0.0, %v161
  %163 = vmatmul.bf16.gmra.mxu0 %v122
  %v164 = vpop.f32.mrf.mxu0
  %v165 = vadd.f32 0.0, %v164
  %v166 = vpop.f32.mrf.mxu0
  %v167 = vadd.f32 0.0, %v166
  %168 = vmatmul.bf16.gmra.mxu0 %v125
  %v169 = vpop.f32.mrf.mxu0
  %v170 = vadd.f32 0.0, %v169
  %v171 = vpop.f32.mrf.mxu0
  %v172 = vadd.f32 0.0, %v171
  %173 = vmatmul.bf16.gmra.mxu0 %v128
  %v174 = vpop.f32.mrf.mxu0
  %v175 = vadd.f32 0.0, %v174
  %v176 = vpop.f32.mrf.mxu0
  %v177 = vadd.f32 0.0, %v176
  %178 = vmatmul.bf16.gmra.mxu0 %v131
  %v179 = vpop.f32.mrf.mxu0
  %v180 = vadd.f32 0.0, %v179
  %v181 = vpop.f32.mrf.mxu0
  %v182 = vadd.f32 0.0, %v181
  %183 = vmatmul.bf16.gmra.mxu0 %v134
  %v184 = vpop.f32.mrf.mxu0
  %v185 = vadd.f32 0.0, %v184
  %v186 = vpop.f32.mrf.mxu0
  %v187 = vadd.f32 0.0, %v186
  %188 = vmatmul.bf16.gmra.mxu0 %v137
  %v189 = vpop.f32.mrf.mxu0
  %v190 = vadd.f32 0.0, %v189
  %v191 = vpop.f32.mrf.mxu0
  %v192 = vadd.f32 0.0, %v191
  %193 = vmatmul.bf16.gmra.mxu0 %v140
  %v194 = vpop.f32.mrf.mxu0
  %v195 = vadd.f32 0.0, %v194
  %v196 = vpop.f32.mrf.mxu0
  %v197 = vadd.f32 0.0, %v196
  %198 = vmatmul.bf16.gmra.mxu0 %v143
  %v199 = vpop.f32.mrf.mxu0
  %v200 = vadd.f32 0.0, %v199
  %v201 = vpop.f32.mrf.mxu0
  %v202 = vadd.f32 0.0, %v201
  %203 = vdwg.mxu0
  %v204 = vmul.f32 %v155, %v155
  %v205 = vmul.f32 %v157, %v157
  %v206 = vmul.f32 %v160, %v160
  %v207 = vmul.f32 %v162, %v162
  %v208 = vmul.f32 %v165, %v165
  %v209 = vmul.f32 %v167, %v167
  %v210 = vmul.f32 %v170, %v170
  %v211 = vmul.f32 %v172, %v172
  %v212 = vmul.f32 %v175, %v175
  %v213 = vmul.f32 %v177, %v177
  %v214 = vmul.f32 %v180, %v180
  %v215 = vmul.f32 %v182, %v182
  %v216 = vmul.f32 %v185, %v185
  %v217 = vmul.f32 %v187, %v187
  %v218 = vmul.f32 %v190, %v190
  %v219 = vmul.f32 %v192, %v192
  %v220 = vmul.f32 %v195, %v195
  %v221 = vmul.f32 %v197, %v197
  %v222 = vmul.f32 %v200, %v200
  %v223 = vmul.f32 %v202, %v202
  %v224 = vmul.f32 %v155, %v204
  %v225 = vmul.f32 %v157, %v205
  %v226 = vmul.f32 %v160, %v206
  %v227 = vmul.f32 %v162, %v207
  %v228 = vmul.f32 %v165, %v208
  %v229 = vmul.f32 %v167, %v209
  %v230 = vmul.f32 %v170, %v210
  %v231 = vmul.f32 %v172, %v211
  %v232 = vmul.f32 %v175, %v212
  %v233 = vmul.f32 %v177, %v213
  %v234 = vmul.f32 %v180, %v214
  %v235 = vmul.f32 %v182, %v215
  %v236 = vmul.f32 %v185, %v216
  %v237 = vmul.f32 %v187, %v217
  %v238 = vmul.f32 %v190, %v218
  %v239 = vmul.f32 %v192, %v219
  %v240 = vmul.f32 %v195, %v220
  %v241 = vmul.f32 %v197, %v221
  %v242 = vmul.f32 %v200, %v222
  %v243 = vmul.f32 %v202, %v223
  %v244 = vmul.f32 %v224, 0.044715
  %v245 = vmul.f32 %v225, 0.044715
  %v246 = vmul.f32 %v226, 0.044715
  %v247 = vmul.f32 %v227, 0.044715
  %v248 = vmul.f32 %v228, 0.044715
  %v249 = vmul.f32 %v229, 0.044715
  %v250 = vmul.f32 %v230, 0.044715
  %v251 = vmul.f32 %v231, 0.044715
  %v252 = vmul.f32 %v232, 0.044715
  %v253 = vmul.f32 %v233, 0.044715
  %v254 = vmul.f32 %v234, 0.044715
  %v255 = vmul.f32 %v235, 0.044715
  %v256 = vmul.f32 %v236, 0.044715
  %v257 = vmul.f32 %v237, 0.044715
  %v258 = vmul.f32 %v238, 0.044715
  %v259 = vmul.f32 %v239, 0.044715
  %v260 = vmul.f32 %v240, 0.044715
  %v261 = vmul.f32 %v241, 0.044715
  %v262 = vmul.f32 %v242, 0.044715
  %v263 = vmul.f32 %v243, 0.044715
  %v264 = vadd.f32 %v155, %v244
  %v265 = vadd.f32 %v157, %v245
  %v266 = vadd.f32 %v160, %v246
  %v267 = vadd.f32 %v162, %v247
  %v268 = vadd.f32 %v165, %v248
  %v269 = vadd.f32 %v167, %v249
  %v270 = vadd.f32 %v170, %v250
  %v271 = vadd.f32 %v172, %v251
  %v272 = vadd.f32 %v175, %v252
  %v273 = vadd.f32 %v177, %v253
  %v274 = vadd.f32 %v180, %v254
  %v275 = vadd.f32 %v182, %v255
  %v276 = vadd.f32 %v185, %v256
  %v277 = vadd.f32 %v187, %v257
  %v278 = vadd.f32 %v190, %v258
  %v279 = vadd.f32 %v192, %v259
  %v280 = vadd.f32 %v195, %v260
  %v281 = vadd.f32 %v197, %v261
  %v282 = vadd.f32 %v200, %v262
  %v283 = vadd.f32 %v202, %v263
  %v284 = vmul.f32 %v264, 0.7978846
  %v285 = vmul.f32 %v265, 0.7978846
  %v286 = vmul.f32 %v266, 0.7978846
  %v287 = vmul.f32 %v267, 0.7978846
  %v288 = vmul.f32 %v268, 0.7978846
  %v289 = vmul.f32 %v269, 0.7978846
  %v290 = vmul.f32 %v270, 0.7978846
  %v291 = vmul.f32 %v271, 0.7978846
  %v292 = vmul.f32 %v272, 0.7978846
  %v293 = vmul.f32 %v273, 0.7978846
  %v294 = vmul.f32 %v274, 0.7978846
  %v295 = vmul.f32 %v275, 0.7978846
  %v296 = vmul.f32 %v276, 0.7978846
  %v297 = vmul.f32 %v277, 0.7978846
  %v298 = vmul.f32 %v278, 0.7978846
  %v299 = vmul.f32 %v279, 0.7978846
  %v300 = vmul.f32 %v280, 0.7978846
  %v301 = vmul.f32 %v281, 0.7978846
  %v302 = vmul.f32 %v282, 0.7978846
  %v303 = vmul.f32 %v283, 0.7978846
  %v304 = vtanh.pop %v284
  %v305 = vtanh.pop %v285
  %v306 = vtanh.pop %v286
  %v307 = vtanh.pop %v287
  %v308 = vtanh.pop %v288
  %v309 = vtanh.pop %v289
  %v310 = vtanh.pop %v290
  %v311 = vtanh.pop %v291
  %v312 = vtanh.pop %v292
  %v313 = vtanh.pop %v293
  %v314 = vtanh.pop %v294
  %v315 = vtanh.pop %v295
  %v316 = vtanh.pop %v296
  %v317 = vtanh.pop %v297
  %v318 = vtanh.pop %v298
  %v319 = vtanh.pop %v299
  %v320 = vtanh.pop %v300
  %v321 = vtanh.pop %v301
  %v322 = vtanh.pop %v302
  %v323 = vtanh.pop %v303
  %v324 = vadd.f32 %v304, 1.0
  %v325 = vadd.f32 %v305, 1.0
  %v326 = vadd.f32 %v306, 1.0
  %v327 = vadd.f32 %v307, 1.0
  %v328 = vadd.f32 %v308, 1.0
  %v329 = vadd.f32 %v309, 1.0
  %v330 = vadd.f32 %v310, 1.0
  %v331 = vadd.f32 %v311, 1.0
  %v332 = vadd.f32 %v312, 1.0
  %v333 = vadd.f32 %v313, 1.0
  %v334 = vadd.f32 %v314, 1.0
  %v335 = vadd.f32 %v315, 1.0
  %v336 = vadd.f32 %v316, 1.0
  %v337 = vadd.f32 %v317, 1.0
  %v338 = vadd.f32 %v318, 1.0
  %v339 = vadd.f32 %v319, 1.0
  %v340 = vadd.f32 %v320, 1.0
  %v341 = vadd.f32 %v321, 1.0
  %v342 = vadd.f32 %v322, 1.0
  %v343 = vadd.f32 %v323, 1.0
  %v344 = vmul.f32 %v324, 0.5
  %v345 = vmul.f32 %v325, 0.5
  %v346 = vmul.f32 %v326, 0.5
  %v347 = vmul.f32 %v327, 0.5
  %v348 = vmul.f32 %v328, 0.5
  %v349 = vmul.f32 %v329, 0.5
  %v350 = vmul.f32 %v330, 0.5
  %v351 = vmul.f32 %v331, 0.5
  %v352 = vmul.f32 %v332, 0.5
  %v353 = vmul.f32 %v333, 0.5
  %v354 = vmul.f32 %v334, 0.5
  %v355 = vmul.f32 %v335, 0.5
  %v356 = vmul.f32 %v336, 0.5
  %v357 = vmul.f32 %v337, 0.5
  %v358 = vmul.f32 %v338, 0.5
  %v359 = vmul.f32 %v339, 0.5
  %v360 = vmul.f32 %v340, 0.5
  %v361 = vmul.f32 %v341, 0.5
  %v362 = vmul.f32 %v342, 0.5
  %v363 = vmul.f32 %v343, 0.5
  %v364 = vmul.f32 %v155, %v344
  %v365 = vmul.f32 %v157, %v345
  %v366 = vmul.f32 %v160, %v346
  %v367 = vmul.f32 %v162, %v347
  %v368 = vmul.f32 %v165, %v348
  %v369 = vmul.f32 %v167, %v349
  %v370 = vmul.f32 %v170, %v350
  %v371 = vmul.f32 %v172, %v351
  %v372 = vmul.f32 %v175, %v352
  %v373 = vmul.f32 %v177, %v353
  %v374 = vmul.f32 %v180, %v354
  %v375 = vmul.f32 %v182, %v355
  %v376 = vmul.f32 %v185, %v356
  %v377 = vmul.f32 %v187, %v357
  %v378 = vmul.f32 %v190, %v358
  %v379 = vmul.f32 %v192, %v359
  %v380 = vmul.f32 %v195, %v360
  %v381 = vmul.f32 %v197, %v361
  %v382 = vmul.f32 %v200, %v362
  %v383 = vmul.f32 %v202, %v363
  %v384 = vpack.c.bf16 %v364, %v364
  %v385 = vpack.c.bf16 %v365, %v365
  %v386 = vpack.c.bf16 %v366, %v366
  %v387 = vpack.c.bf16 %v367, %v367
  %v388 = vpack.c.bf16 %v368, %v368
  %v389 = vpack.c.bf16 %v369, %v369
  %v390 = vpack.c.bf16 %v370, %v370
  %v391 = vpack.c.bf16 %v371, %v371
  %v392 = vpack.c.bf16 %v372, %v372
  %v393 = vpack.c.bf16 %v373, %v373
  %v394 = vpack.c.bf16 %v374, %v374
  %v395 = vpack.c.bf16 %v375, %v375
  %v396 = vpack.c.bf16 %v376, %v376
  %v397 = vpack.c.bf16 %v377, %v377
  %v398 = vpack.c.bf16 %v378, %v378
  %v399 = vpack.c.bf16 %v379, %v379
  %v400 = vpack.c.bf16 %v380, %v380
  %v401 = vpack.c.bf16 %v381, %v381
  %v402 = vpack.c.bf16 %v382, %v382
  %v403 = vpack.c.bf16 %v383, %v383
  %404 = vst [vmem:[%s2] sm:$0xf] %v384
  %405 = vst [vmem:[%s2 + $0x4] sm:$0xf] %v385
  %406 = vst [vmem:[%s2 + $0x8] sm:$0xf] %v386
  %407 = vst [vmem:[%s2 + $0xc] sm:$0xf] %v387
  %408 = vst [vmem:[%s2 + $0x10] sm:$0xf] %v388
  %409 = vst [vmem:[%s2 + $0x14] sm:$0xf] %v389
  %410 = vst [vmem:[%s2 + $0x18] sm:$0xf] %v390
  %411 = vst [vmem:[%s2 + $0x1c] sm:$0xf] %v391
  %412 = vst [vmem:[%s2 + $0x20] sm:$0xf] %v392
  %413 = vst [vmem:[%s2 + $0x24] sm:$0xf] %v393
  %414 = vst [vmem:[%s2 + $0x28] sm:$0xf] %v394
  %415 = vst [vmem:[%s2 + $0x2c] sm:$0xf] %v395
  %416 = vst [vmem:[%s2 + $0x30] sm:$0xf] %v396
  %417 = vst [vmem:[%s2 + $0x34] sm:$0xf] %v397
  %418 = vst [vmem:[%s2 + $0x38] sm:$0xf] %v398
  %419 = vst [vmem:[%s2 + $0x3c] sm:$0xf] %v399
  %420 = vst [vmem:[%s2 + $0x40] sm:$0xf] %v400
  %421 = vst [vmem:[%s2 + $0x44] sm:$0xf] %v401
  %422 = vst [vmem:[%s2 + $0x48] sm:$0xf] %v402
  %423 = vst [vmem:[%s2 + $0x4c] sm:$0xf] %v403
  // Predicated region
  $region10: #{fastvit_s2_forward.1} parent=0 // pred_check
    _
  $region11: #{fastvit_s2_forward.1} parent=0 // pred_check_branch
    %425 = sbr.rel (0) target = $region13
  $region12: #{fastvit_s2_forward.1} parent=0 // pred_region
    _
  $region13: #{fastvit_s2_forward.1} parent=0 // pred_fallthru
    _
  // Predicated region
  $region14: #{fastvit_s2_forward.1} parent=0 // pred_check
    _
  $region15: #{fastvit_s2_forward.1} parent=0 // pred_check_branch
    %427 = sbr.rel (0) target = $region17
  $region16: #{fastvit_s2_forward.1} parent=0 // pred_region
    _
  $region17: #{fastvit_s2_forward.1} parent=0 // pred_fallthru
    _

</llo_original>
